<compile_context>
chip_gen: v5e
topology: v5e:2x2
jax: 0.10.0
libtpu: 0.0.40
codegen_flags: <defaults>
</compile_context>

<pallas_src>
import functools
import math

import jax
import jax.numpy as jnp
from jax import lax
from jax.experimental import pallas as pl
from jax.experimental.pallas import tpu as pltpu


def _vmem_limit_bytes():
    # ~48 MiB on 128-MiB-VMEM parts (v5e/v6e), ~32 MiB on 64-MiB parts (v7x).
    try:
        cap = int(pltpu.get_tpu_info().vmem_capacity_bytes)
        return min(48 * 1024 * 1024, cap // 2)
    except Exception:
        return 32 * 1024 * 1024


VMEM_LIMIT = _vmem_limit_bytes()


# ---------------------------------------------------------------------------
# Generic matmul + bias + activation (stem conv and last 1x1 conv)
# ---------------------------------------------------------------------------
def _mm_kernel(x_ref, w_ref, b_ref, o_ref, *, act):
    acc = jnp.dot(x_ref[...], w_ref[...], preferred_element_type=jnp.float32)
    acc = acc + b_ref[...].astype(jnp.float32)
    if act == "relu6":
        acc = jnp.clip(acc, 0.0, 6.0)
    o_ref[...] = acc.astype(o_ref.dtype)


def matmul_bias_act(x, w, b, act="none", tm=512, tn=256, out_dtype=jnp.bfloat16):
    """y = act(x @ w + b); M and N both tiled so the weight DMA pipelines."""
    M, K = x.shape
    _, N = w.shape
    TM = M if M <= tm else tm
    TN = N if N <= tn else tn
    grid = (pl.cdiv(M, TM), pl.cdiv(N, TN))
    return pl.pallas_call(
        functools.partial(_mm_kernel, act=act),
        out_shape=jax.ShapeDtypeStruct((M, N), out_dtype),
        grid=grid,
        in_specs=[
            pl.BlockSpec((TM, K), lambda i, j: (i, 0)),
            pl.BlockSpec((K, TN), lambda i, j: (0, j)),
            pl.BlockSpec((1, TN), lambda i, j: (0, j)),
        ],
        out_specs=pl.BlockSpec((TM, TN), lambda i, j: (i, j)),
        compiler_params=pltpu.CompilerParams(
            dimension_semantics=("parallel", "parallel"),
            vmem_limit_bytes=VMEM_LIMIT),
    )(x, w, b.reshape(1, N))


# ---------------------------------------------------------------------------
# Fused inverted-residual block, stride 1
#   expand 1x1 + ReLU6 -> depthwise 3x3 (pad 1) + ReLU6 -> project 1x1 [+ res]
# Activations are flat (N, H*W, C); the padded hidden lives in a flat VMEM
# scratch with (W+1)-row zero halos; taps are static shifted slices, column
# wrap-around is killed with iota masks.
# ---------------------------------------------------------------------------
def _ir_s1_kernel(*refs, expand, use_res, W):
    if expand:
        x_ref, ew_ref, eb_ref, dw_ref, db_ref, pw_ref, pb_ref, o_ref, hbuf = refs
    else:
        x_ref, dw_ref, db_ref, pw_ref, pb_ref, o_ref, hbuf = refs
    HW = x_ref.shape[1]
    Chid = hbuf.shape[1]
    pad = W + 1

    # Zero halo strips every grid step (safe under megacore grid sharding).
    hbuf[pl.ds(0, pad), :] = jnp.zeros((pad, Chid), hbuf.dtype)
    hbuf[pl.ds(pad + HW, pad), :] = jnp.zeros((pad, Chid), hbuf.dtype)

    x = x_ref[0]                                            # (HW, Cin) bf16
    if expand:
        h = jnp.dot(x, ew_ref[...], preferred_element_type=jnp.float32)
        h = jnp.clip(h + eb_ref[...], 0.0, 6.0)
    else:
        h = x.astype(jnp.float32)
    hbuf[pl.ds(pad, HW), :] = h

    # Column-validity masks for the flattened-HW layout (row wrap of the
    # +/-1 column shifts); row over/underflow lands in the zero halos.
    col = lax.broadcasted_iota(jnp.int32, (HW, 1), 0) % W
    not_left = (col > 0).astype(jnp.float32)
    not_right = (col < W - 1).astype(jnp.float32)

    acc = None
    for kh in range(3):
        for kw in range(3):
            k = kh * 3 + kw
            start = pad + (kh - 1) * W + (kw - 1)           # static
            tap = hbuf[pl.ds(start, HW), :]                 # (HW, Chid) f32
            term = tap * dw_ref[k:k + 1, :].astype(jnp.float32)
            if kw == 0:
                term = term * not_left
            elif kw == 2:
                term = term * not_right
            acc = term if acc is None else acc + term
    acc = jnp.clip(acc + db_ref[...], 0.0, 6.0)

    out = jnp.dot(acc.astype(pw_ref.dtype), pw_ref[...],
                  preferred_element_type=jnp.float32)
    out = out + pb_ref[...]
    if use_res:
        out = out + x.astype(jnp.float32)
    o_ref[0] = out.astype(o_ref.dtype)


def fused_ir_s1(x_flat, p, H, W):
    N, HW, Cin = x_flat.shape
    assert HW == H * W
    Chid = p["dw_w"].shape[1]
    Cout = p["proj_w"].shape[1]
    expand = "expand_w" in p
    use_res = Cin == Cout

    args = [x_flat]
    in_specs = [pl.BlockSpec((1, HW, Cin), lambda n: (n, 0, 0))]
    if expand:
        args += [p["expand_w"], p["expand_b"].reshape(1, Chid)]
        in_specs += [pl.BlockSpec((Cin, Chid), lambda n: (0, 0)),
                     pl.BlockSpec((1, Chid), lambda n: (0, 0))]
    args += [p["dw_w"], p["dw_b"].reshape(1, Chid),
             p["proj_w"], p["proj_b"].reshape(1, Cout)]
    in_specs += [pl.BlockSpec((9, Chid), lambda n: (0, 0)),
                 pl.BlockSpec((1, Chid), lambda n: (0, 0)),
                 pl.BlockSpec((Chid, Cout), lambda n: (0, 0)),
                 pl.BlockSpec((1, Cout), lambda n: (0, 0))]

    return pl.pallas_call(
        functools.partial(_ir_s1_kernel, expand=expand, use_res=use_res, W=W),
        out_shape=jax.ShapeDtypeStruct((N, HW, Cout), x_flat.dtype),
        grid=(N,),
        in_specs=in_specs,
        out_specs=pl.BlockSpec((1, HW, Cout), lambda n: (n, 0, 0)),
        scratch_shapes=[pltpu.VMEM((HW + 2 * (W + 1), Chid), jnp.float32)],
        compiler_params=pltpu.CompilerParams(
            dimension_semantics=("parallel",),
            vmem_limit_bytes=VMEM_LIMIT),
    )(*args)


# ---------------------------------------------------------------------------
# Fused inverted-residual block, stride 2 (always has an expand stage in MBv2)
# The 4 even/odd spatial phases of the (small, un-expanded) input are built in
# XLA; expansion, the 9 depthwise taps (computed only at kept output
# positions), and the projection all happen in one kernel with the expanded
# phases held in VMEM scratches.
# ---------------------------------------------------------------------------
def _ir_s2_kernel(p00_ref, p01_ref, p10_ref, p11_ref, ew_ref, eb_ref,
                  dw_ref, db_ref, pw_ref, pb_ref, o_ref,
                  e00, e01, e10, e11, *, valid):
    _, Ho, Wo, Cout = o_ref.shape
    ew = ew_ref[...]
    eb = eb_ref[...]
    phase_in = ((p00_ref, p01_ref), (p10_ref, p11_ref))
    phase_e = ((e00, e01), (e10, e11))

    # Expand each phase; only positions backed by real input pixels are
    # written (conv zero-padding must stay exactly zero AFTER the expansion).
    for a in range(2):
        for b in range(2):
            p_ref = phase_in[a][b]
            e_ref = phase_e[a][b]
            e_ref[...] = jnp.zeros_like(e_ref)
            r_lo, r_hi, c_lo, c_len = valid[a][b]

            def row_body(r, carry, p_ref=p_ref, e_ref=e_ref,
                         c_lo=c_lo, c_len=c_len):
                row = p_ref[0, r, pl.ds(c_lo, c_len), :]        # (c_len, Cin)
                v = jnp.dot(row, ew, preferred_element_type=jnp.float32) + eb
                e_ref[r, pl.ds(c_lo, c_len), :] = jnp.clip(v, 0.0, 6.0)
                return carry

            lax.fori_loop(r_lo, r_hi, row_body, 0)

    db = db_ref[...]
    pw = pw_ref[...]
    pb = pb_ref[...]

    def out_row_body(r, carry):
        acc = None
        for kh in range(3):
            r0 = kh // 2
            for kw in range(3):
                c0 = kw // 2
                k = kh * 3 + kw
                e_ref = phase_e[kh % 2][kw % 2]
                tap = e_ref[r + r0, pl.ds(c0, Wo), :]           # (Wo, Chid) f32
                term = tap * dw_ref[k:k + 1, :].astype(jnp.float32)
                acc = term if acc is None else acc + term
        acc = jnp.clip(acc + db, 0.0, 6.0)
        out = jnp.dot(acc.astype(pw.dtype), pw,
                      preferred_element_type=jnp.float32) + pb
        o_ref[0, r] = out.astype(o_ref.dtype)
        return carry

    lax.fori_loop(0, Ho, out_row_body, 0)


def fused_ir_s2(x_flat, p, H, W):
    N, HW, Cin = x_flat.shape
    assert HW == H * W and "expand_w" in p
    Chid = p["dw_w"].shape[1]
    Cout = p["proj_w"].shape[1]
    Ho = (H - 1) // 2 + 1
    Wo = (W - 1) // 2 + 1
    Hp, Wp = Ho + 1, Wo + 1

    x = x_flat.reshape(N, H, W, Cin)
    xp = jnp.pad(x, ((0, 0), (1, 1), (1, 1), (0, 0)))
    phases = []
    for a in range(2):
        for b in range(2):
            ph = xp[:, a::2, b::2, :]
            ph = jnp.pad(ph, ((0, 0), (0, Hp - ph.shape[1]),
                              (0, Wp - ph.shape[2]), (0, 0)))
            phases.append(ph)

    def vrange(n, off):  # phase index r is a real pixel iff 2r+off in [1, n]
        lo = 1 if off == 0 else 0
        hi = (n - off) // 2 + 1
        return lo, hi

    valid = tuple(
        tuple((vrange(H, a)[0], vrange(H, a)[1],
               vrange(W, b)[0], vrange(W, b)[1] - vrange(W, b)[0])
              for b in range(2))
        for a in range(2))

    in_specs = ([pl.BlockSpec((1, Hp, Wp, Cin), lambda n: (n, 0, 0, 0))] * 4 + [
        pl.BlockSpec((Cin, Chid), lambda n: (0, 0)),
        pl.BlockSpec((1, Chid), lambda n: (0, 0)),
        pl.BlockSpec((9, Chid), lambda n: (0, 0)),
        pl.BlockSpec((1, Chid), lambda n: (0, 0)),
        pl.BlockSpec((Chid, Cout), lambda n: (0, 0)),
        pl.BlockSpec((1, Cout), lambda n: (0, 0)),
    ])

    y = pl.pallas_call(
        functools.partial(_ir_s2_kernel, valid=valid),
        out_shape=jax.ShapeDtypeStruct((N, Ho, Wo, Cout), x_flat.dtype),
        grid=(N,),
        in_specs=in_specs,
        out_specs=pl.BlockSpec((1, Ho, Wo, Cout), lambda n: (n, 0, 0, 0)),
        scratch_shapes=[pltpu.VMEM((Hp, Wp, Chid), jnp.float32)] * 4,
        compiler_params=pltpu.CompilerParams(
            dimension_semantics=("parallel",),
            vmem_limit_bytes=VMEM_LIMIT),
    )(*phases, p["expand_w"], p["expand_b"].reshape(1, Chid),
      p["dw_w"], p["dw_b"].reshape(1, Chid),
      p["proj_w"], p["proj_b"].reshape(1, Cout))
    return y.reshape(N, Ho * Wo, Cout), Ho, Wo


# ---------------------------------------------------------------------------
# Stem conv and head
# ---------------------------------------------------------------------------
def conv3x3_s2_stem(x_nhwc, w_mat, b):
    """Stem 3x3/s2/p1 conv via XLA im2col + Pallas matmul (small fraction of traffic)."""
    # TODO(synk): fold the im2col into the matmul kernel to drop the patches round trip.
    N, H, W, C = x_nhwc.shape
    Ho = (H - 1) // 2 + 1
    Wo = (W - 1) // 2 + 1
    xp = jnp.pad(x_nhwc, ((0, 0), (1, 1), (1, 1), (0, 0)))
    taps = [xp[:, kh:kh + 2 * Ho:2, kw:kw + 2 * Wo:2, :]
            for kh in range(3) for kw in range(3)]
    patches = jnp.concatenate(taps, axis=-1).reshape(N * Ho * Wo, 9 * C)
    y = matmul_bias_act(patches, w_mat, b, act="relu6")
    return y.reshape(N, Ho * Wo, -1), Ho, Wo


def _head_kernel(x_ref, w_ref, b_ref, o_ref):
    """Linear(size->1) + tanh: lane-dense VPU multiply + reductions."""
    x = x_ref[...].astype(jnp.float32)          # (N, HW, C)
    w = w_ref[...].astype(jnp.float32)          # (HW, C)
    s = jnp.sum(x * w, axis=2, keepdims=True)   # (N, HW, 1)   lane reduce
    s = jnp.sum(s, axis=1)                      # (N, 1)
    o_ref[...] = jnp.tanh(s + b_ref[...])


def head_linear_tanh(x_flat, w_hwc, b11):
    N, HW, C = x_flat.shape
    return pl.pallas_call(
        _head_kernel,
        out_shape=jax.ShapeDtypeStruct((N, 1), jnp.float32),
        compiler_params=pltpu.CompilerParams(vmem_limit_bytes=VMEM_LIMIT),
    )(x_flat, w_hwc, b11)


# ---------------------------------------------------------------------------
# Forward pass
# ---------------------------------------------------------------------------
def mobilenet_steer_forward(x_nchw, params):
    # NCHW -> NHWC (channels on lanes); bf16 activations, f32 accumulation.
    x = jnp.transpose(x_nchw, (0, 2, 3, 1)).astype(jnp.bfloat16)
    x, H, W = conv3x3_s2_stem(x, params["stem_w"], params["stem_b"])
    for blk in params["blocks"]:
        if blk["stride"] == 1:
            x = fused_ir_s1(x, blk, H, W)
        else:
            x, H, W = fused_ir_s2(x, blk, H, W)
    # features[18]: Conv 1x1 (320 -> 1280) + BN + ReLU6
    N, HW, C = x.shape
    y = matmul_bias_act(x.reshape(N * HW, C), params["last_w"],
                        params["last_b"], act="relu6").reshape(N, HW, -1)
    # nn.Dropout() is identity in eval mode.
    # TODO(synk): training-mode dropout (random mask) not implemented.
    return head_linear_tanh(y, params["head_w"], params["head_b"])


# ---------------------------------------------------------------------------
# Deterministic parameter construction (MobileNetV2 architecture, BN folded)
# ---------------------------------------------------------------------------
_MBV2_CFG = [  # (expand_ratio, channels, num_blocks, first_stride)
    (1, 16, 1, 1), (6, 24, 2, 2), (6, 32, 3, 2), (6, 64, 4, 2),
    (6, 96, 3, 1), (6, 160, 3, 2), (6, 320, 1, 1),
]


def _init_convbn(key, cin, cout, k):
    k1, k2, k3, k4 = jax.random.split(key, 4)
    w = jax.random.normal(k1, (cout, cin, k, k), jnp.float32) / math.sqrt(cin * k * k)
    gamma = 1.0 + 0.1 * jax.random.normal(k2, (cout,), jnp.float32)
    beta = 0.1 * jax.random.normal(k3, (cout,), jnp.float32)
    mean = 0.1 * jax.random.normal(k4, (cout,), jnp.float32)
    var = jnp.ones((cout,), jnp.float32)
    scale = gamma / jnp.sqrt(var + 1e-5)
    return w * scale[:, None, None, None], beta - mean * scale


def _conv_out(h, stride):  # k=3, pad=1
    return (h + 2 - 3) // stride + 1


def build_params(key, input_shape):
    counter = [0]

    def nk():
        counter[0] += 1
        return jax.random.fold_in(key, counter[0])

    bf16 = jnp.bfloat16
    params = {}
    h, w_sp = input_shape

    # features[0]: Conv 3x3 s2 (3->32) + BN + ReLU6
    sw, sb = _init_convbn(nk(), 3, 32, 3)
    params["stem_w"] = jnp.transpose(sw, (2, 3, 1, 0)).reshape(27, 32).astype(bf16)
    params["stem_b"] = sb
    h, w_sp = _conv_out(h, 2), _conv_out(w_sp, 2)

    blocks = []
    cin = 32
    for t, c, n, s in _MBV2_CFG:
        for i in range(n):
            stride = s if i == 0 else 1
            hidden = cin * t
            blk = {"stride": stride, "oup": c}
            if t != 1:
                ew, eb = _init_convbn(nk(), cin, hidden, 1)
                blk["expand_w"] = ew[:, :, 0, 0].T.astype(bf16)
                blk["expand_b"] = eb
            dw, db = _init_convbn(nk(), 1, hidden, 3)  # depthwise weight [C,1,3,3]
            blk["dw_w"] = jnp.transpose(dw[:, 0, :, :], (1, 2, 0)).reshape(9, hidden).astype(bf16)
            blk["dw_b"] = db
            pw, pb = _init_convbn(nk(), hidden, c, 1)
            blk["proj_w"] = pw[:, :, 0, 0].T.astype(bf16)
            blk["proj_b"] = pb
            blocks.append(blk)
            h, w_sp = _conv_out(h, stride), _conv_out(w_sp, stride)
            cin = c
    params["blocks"] = blocks

    # features[18]: Conv 1x1 (320->1280) + BN + ReLU6
    lw, lb = _init_convbn(nk(), 320, 1280, 1)
    params["last_w"] = lw[:, :, 0, 0].T.astype(bf16)
    params["last_b"] = lb

    # head: Linear(size -> 1), built in PyTorch NCHW-flatten order, permuted
    # once at build time to the (H*W, C) layout used by the head kernel.
    size = 1280 * h * w_sp
    hw_nchw = jax.random.normal(nk(), (size,), jnp.float32) / math.sqrt(size)
    hw_hwc = jnp.transpose(hw_nchw.reshape(1280, h, w_sp), (1, 2, 0)).reshape(h * w_sp, 1280)
    params["head_w"] = hw_hwc.astype(bf16)
    params["head_b"] = (0.01 * jax.random.normal(nk(), (1,), jnp.float32)).reshape(1, 1)
    return params


# ---------------------------------------------------------------------------
if __name__ == "__main__":
    key = jax.random.PRNGKey(0)
    input_shape = (32, 32)            # small stand-in for the default (150, 200)
    params = build_params(jax.random.fold_in(key, 1), input_shape)

    x = jax.random.normal(jax.random.fold_in(key, 2), (2, 3, *input_shape), jnp.float32)
    y = mobilenet_steer_forward(x, params)
    jax.block_until_ready(y)

    assert y.shape == (2, 1), y.shape
    assert bool(jnp.all(jnp.isfinite(y)))
    assert bool(jnp.all(jnp.abs(y) <= 1.0))   # tanh output
    print("KERNEL_OK")
</pallas_src>

<mosaic_0001>
module attributes {stable_mosaic.version = 11 : i64} {
  func.func @_mm_kernel(%arg0: i32, %arg1: i32, %arg2: memref<512x27xbf16, #tpu.memory_space<vmem>>, %arg3: memref<27x32xbf16, #tpu.memory_space<vmem>>, %arg4: memref<1x32xf32, #tpu.memory_space<vmem>>, %arg5: memref<512x32xbf16, #tpu.memory_space<vmem>>) attributes {dimension_semantics = [#tpu.dimension_semantics<parallel>, #tpu.dimension_semantics<parallel>], iteration_bounds = array<i64: 1, 1>, scalar_prefetch = 0 : i64, scratch_operands = 0 : i64, tpu.core_type = #tpu.core_type<tc>, window_params = [{transform_indices = @transform_0, window_bounds = array<i64: 512, 27>}, {transform_indices = @transform_1, window_bounds = array<i64: 27, 32>}, {transform_indices = @transform_2, window_bounds = array<i64: 1, 32>}, {transform_indices = @transform_3, window_bounds = array<i64: 512, 32>}]} {
    %c0 = arith.constant 0 : index
    %c0_0 = arith.constant 0 : index
    %0 = vector.load %arg2[%c0, %c0_0] : memref<512x27xbf16, #tpu.memory_space<vmem>>, vector<512x27xbf16>
    %c0_1 = arith.constant 0 : index
    %c0_2 = arith.constant 0 : index
    %1 = vector.load %arg3[%c0_1, %c0_2] : memref<27x32xbf16, #tpu.memory_space<vmem>>, vector<27x32xbf16>
    %cst = arith.constant dense<0.000000e+00> : vector<512x32xf32>
    %2 = tpu.matmul %0, %1, %cst {dimension_numbers = #tpu.dot_dimension_numbers<[1], [0], [0], [1], [0, 0, 1, 1], [], []>} : vector<512x27xbf16>, vector<27x32xbf16>, vector<512x32xf32> -> vector<512x32xf32>
    %c0_3 = arith.constant 0 : index
    %c0_4 = arith.constant 0 : index
    %3 = vector.load %arg4[%c0_3, %c0_4] : memref<1x32xf32, #tpu.memory_space<vmem>>, vector<1x32xf32>
    %4 = vector.broadcast %3 : vector<1x32xf32> to vector<512x32xf32>
    %5 = arith.addf %2, %4 : vector<512x32xf32>
    %cst_5 = arith.constant 0.000000e+00 : f32
    %cst_6 = arith.constant 6.000000e+00 : f32
    %6 = vector.broadcast %cst_5 : f32 to vector<512x32xf32>
    %7 = arith.maximumf %6, %5 : vector<512x32xf32>
    %8 = vector.broadcast %cst_6 : f32 to vector<512x32xf32>
    %9 = arith.minimumf %8, %7 : vector<512x32xf32>
    %10 = arith.truncf %9 : vector<512x32xf32> to vector<512x32xbf16>
    %c0_7 = arith.constant 0 : index
    %c0_8 = arith.constant 0 : index
    %11 = vector.load %arg5[%c0_7, %c0_8] : memref<512x32xbf16, #tpu.memory_space<vmem>>, vector<512x32xbf16>
    tpu.vector_store %arg5[%c0_7, %c0_8], %10 {strides = array<i32>} : memref<512x32xbf16, #tpu.memory_space<vmem>>, vector<512x32xbf16>,
    return
  }
  func.func @transform_0(%arg0: i32, %arg1: i32) -> (i32, i32) {
    %c0_i32 = arith.constant 0 : i32
    %c0_i32_0 = arith.constant 0 : i32
    return %arg0, %c0_i32 : i32, i32
  }
  func.func @transform_1(%arg0: i32, %arg1: i32) -> (i32, i32) {
    %c0_i32 = arith.constant 0 : i32
    %c0_i32_0 = arith.constant 0 : i32
    return %c0_i32, %arg1 : i32, i32
  }
  func.func @transform_2(%arg0: i32, %arg1: i32) -> (i32, i32) {
    %c0_i32 = arith.constant 0 : i32
    %c0_i32_0 = arith.constant 0 : i32
    return %c0_i32, %arg1 : i32, i32
  }
  func.func @transform_3(%arg0: i32, %arg1: i32) -> (i32, i32) {
    %c0_i32 = arith.constant 0 : i32
    return %arg0, %arg1 : i32, i32
  }
}

</mosaic_0001>

<llo_original>
// kernel: tpu_custom_call.1
$region0: #{tpu_custom_call.1}
  #allocation0 [shape = 'u32[]', space=smem, size = 0x4, offset = 0x4, fixed_abs, tag = 'smem constant byte address 0x4 - core index']
  #allocation1 [shape = 'u32[72,128]{1,0:T(1,128)}', space=vmem, size = 0x9000, scoped, tag = 'internal scratch']
  %s0 = inlined_call_operand.vmem [shape: bf16[512,27], index: 0, kind: input, shape index: {}]
  %s1 = inlined_call_operand.vmem [shape: bf16[27,32], index: 1, kind: input, shape index: {}]
  %s2 = inlined_call_operand.vmem [shape: f32[1,32], index: 2, kind: input, shape index: {}]
  %s3 = inlined_call_operand.vmem [shape: bf16[512,32], index: 3, kind: output, shape index: {}]
  %s4 = sld [smem:[#allocation0]]
  $region22: #{tpu_custom_call.1} parent=0
    _
  %s6 = ssub.s32 1, %s4
  %s7 = scalar_select 0, %s6, %s4
  // Predicated region
  $region2: #{tpu_custom_call.1} parent=0 // pred_check
    _
  $region3: #{tpu_custom_call.1} parent=0 // pred_check_branch
    %9 = sbr.rel (0) target = $region5
  $region4: #{tpu_custom_call.1} parent=0 // pred_region
    _
  $region5: #{tpu_custom_call.1} parent=0 // pred_fallthru
    _
  // Predicated region
  $region6: #{tpu_custom_call.1} parent=0 // pred_check
    _
  $region7: #{tpu_custom_call.1} parent=0 // pred_check_branch
    %11 = sbr.rel (0) target = $region9
  $region8: #{tpu_custom_call.1} parent=0 // pred_region
    _
  $region9: #{tpu_custom_call.1} parent=0 // pred_fallthru
    _
  // Predicated region
  $region10: #{tpu_custom_call.1} parent=0 // pred_check
    _
  $region11: #{tpu_custom_call.1} parent=0 // pred_check_branch
    %13 = sbr.rel (0) target = $region13
  $region12: #{tpu_custom_call.1} parent=0 // pred_region
    _
  $region13: #{tpu_custom_call.1} parent=0 // pred_fallthru
    _
  %v15 = vld [vmem:[%s0] sm:$0xf]
  %v16 = vld [vmem:[%s0 + $0x4] sm:$0xf]
  %v17 = vld [vmem:[%s0 + $0x8] sm:$0xf]
  %v18 = vld [vmem:[%s0 + $0xc] sm:$0xf]
  %v19 = vld [vmem:[%s0 + $0x10] sm:$0xf]
  %v20 = vld [vmem:[%s0 + $0x14] sm:$0xf]
  %v21 = vld [vmem:[%s0 + $0x18] sm:$0xf]
  %v22 = vld [vmem:[%s0 + $0x1c] sm:$0xf]
  %v23 = vld [vmem:[%s0 + $0x20] sm:$0xf]
  %v24 = vld [vmem:[%s0 + $0x24] sm:$0xf]
  %v25 = vld [vmem:[%s0 + $0x28] sm:$0xf]
  %v26 = vld [vmem:[%s0 + $0x2c] sm:$0xf]
  %v27 = vld [vmem:[%s0 + $0x30] sm:$0xf]
  %v28 = vld [vmem:[%s0 + $0x34] sm:$0xf]
  %v29 = vld [vmem:[%s0 + $0x38] sm:$0xf]
  %v30 = vld [vmem:[%s0 + $0x3c] sm:$0xf]
  %v31 = vld [vmem:[%s0 + $0x40] sm:$0xf]
  %v32 = vld [vmem:[%s0 + $0x44] sm:$0xf]
  %v33 = vld [vmem:[%s0 + $0x48] sm:$0xf]
  %v34 = vld [vmem:[%s0 + $0x4c] sm:$0xf]
  %v35 = vld [vmem:[%s0 + $0x50] sm:$0xf]
  %v36 = vld [vmem:[%s0 + $0x54] sm:$0xf]
  %v37 = vld [vmem:[%s0 + $0x58] sm:$0xf]
  %v38 = vld [vmem:[%s0 + $0x5c] sm:$0xf]
  %v39 = vld [vmem:[%s0 + $0x60] sm:$0xf]
  %v40 = vld [vmem:[%s0 + $0x64] sm:$0xf]
  %v41 = vld [vmem:[%s0 + $0x68] sm:$0xf]
  %v42 = vld [vmem:[%s0 + $0x6c] sm:$0xf]
  %v43 = vld [vmem:[%s0 + $0x70] sm:$0xf]
  %v44 = vld [vmem:[%s0 + $0x74] sm:$0xf]
  %v45 = vld [vmem:[%s0 + $0x78] sm:$0xf]
  %v46 = vld [vmem:[%s0 + $0x7c] sm:$0xf]
  %v47 = vld [vmem:[%s0 + $0x80] sm:$0xf]
  %v48 = vld [vmem:[%s0 + $0x84] sm:$0xf]
  %v49 = vld [vmem:[%s0 + $0x88] sm:$0xf]
  %v50 = vld [vmem:[%s0 + $0x8c] sm:$0xf]
  %v51 = vld [vmem:[%s0 + $0x90] sm:$0xf]
  %v52 = vld [vmem:[%s0 + $0x94] sm:$0xf]
  %v53 = vld [vmem:[%s0 + $0x98] sm:$0xf]
  %v54 = vld [vmem:[%s0 + $0x9c] sm:$0xf]
  %v55 = vld [vmem:[%s0 + $0xa0] sm:$0xf]
  %v56 = vld [vmem:[%s0 + $0xa4] sm:$0xf]
  %v57 = vld [vmem:[%s0 + $0xa8] sm:$0xf]
  %v58 = vld [vmem:[%s0 + $0xac] sm:$0xf]
  %v59 = vld [vmem:[%s0 + $0xb0] sm:$0xf]
  %v60 = vld [vmem:[%s0 + $0xb4] sm:$0xf]
  %v61 = vld [vmem:[%s0 + $0xb8] sm:$0xf]
  %v62 = vld [vmem:[%s0 + $0xbc] sm:$0xf]
  %v63 = vld [vmem:[%s0 + $0xc0] sm:$0xf]
  %v64 = vld [vmem:[%s0 + $0xc4] sm:$0xf]
  %v65 = vld [vmem:[%s0 + $0xc8] sm:$0xf]
  %v66 = vld [vmem:[%s0 + $0xcc] sm:$0xf]
  %v67 = vld [vmem:[%s0 + $0xd0] sm:$0xf]
  %v68 = vld [vmem:[%s0 + $0xd4] sm:$0xf]
  %v69 = vld [vmem:[%s0 + $0xd8] sm:$0xf]
  %v70 = vld [vmem:[%s0 + $0xdc] sm:$0xf]
  %v71 = vld [vmem:[%s0 + $0xe0] sm:$0xf]
  %v72 = vld [vmem:[%s0 + $0xe4] sm:$0xf]
  %v73 = vld [vmem:[%s0 + $0xe8] sm:$0xf]
  %v74 = vld [vmem:[%s0 + $0xec] sm:$0xf]
  %v75 = vld [vmem:[%s0 + $0xf0] sm:$0xf]
  %v76 = vld [vmem:[%s0 + $0xf4] sm:$0xf]
  %v77 = vld [vmem:[%s0 + $0xf8] sm:$0xf]
  %v78 = vld [vmem:[%s0 + $0xfc] sm:$0xf]
  %v79 = vld [vmem:[%s1] sm:$0xf]
  %v80 = vld [vmem:[%s1 + $0x4] sm:$0xf]
  %v81 = vld [vmem:[%s1 + $0x8] sm:$0xf]
  %v82 = vld [vmem:[%s1 + $0xc] sm:$0x3]
  %v83 = vld [vmem:[%s2] sm:$0x1]
  %v85 = vperm.slane %v83, 0
  %v151 = vunpack.c.l.b16 %v15
  %v152 = vunpack.c.l.b16 %v16
  %v153 = vunpack.c.l.b16 %v17
  %v154 = vunpack.c.l.b16 %v18
  %v155 = vunpack.c.l.b16 %v19
  %v156 = vunpack.c.l.b16 %v20
  %v157 = vunpack.c.l.b16 %v21
  %v158 = vunpack.c.l.b16 %v22
  %v159 = vunpack.c.l.b16 %v23
  %v160 = vunpack.c.l.b16 %v24
  %v161 = vunpack.c.l.b16 %v25
  %v162 = vunpack.c.l.b16 %v26
  %v163 = vunpack.c.l.b16 %v27
  %v164 = vunpack.c.l.b16 %v28
  %v165 = vunpack.c.l.b16 %v29
  %v166 = vunpack.c.l.b16 %v30
  %v167 = vunpack.c.l.b16 %v31
  %v168 = vunpack.c.l.b16 %v32
  %v169 = vunpack.c.l.b16 %v33
  %v170 = vunpack.c.l.b16 %v34
  %v171 = vunpack.c.l.b16 %v35
  %v172 = vunpack.c.l.b16 %v36
  %v173 = vunpack.c.l.b16 %v37
  %v174 = vunpack.c.l.b16 %v38
  %v175 = vunpack.c.l.b16 %v39
  %v176 = vunpack.c.l.b16 %v40
  %v177 = vunpack.c.l.b16 %v41
  %v178 = vunpack.c.l.b16 %v42
  %v179 = vunpack.c.l.b16 %v43
  %v180 = vunpack.c.l.b16 %v44
  %v181 = vunpack.c.l.b16 %v45
  %v182 = vunpack.c.l.b16 %v46
  %v183 = vunpack.c.l.b16 %v47
  %v184 = vunpack.c.l.b16 %v48
  %v185 = vunpack.c.l.b16 %v49
  %v186 = vunpack.c.l.b16 %v50
  %v187 = vunpack.c.l.b16 %v51
  %v188 = vunpack.c.l.b16 %v52
  %v189 = vunpack.c.l.b16 %v53
  %v190 = vunpack.c.l.b16 %v54
  %v191 = vunpack.c.l.b16 %v55
  %v192 = vunpack.c.l.b16 %v56
  %v193 = vunpack.c.l.b16 %v57
  %v194 = vunpack.c.l.b16 %v58
  %v195 = vunpack.c.l.b16 %v59
  %v196 = vunpack.c.l.b16 %v60
  %v197 = vunpack.c.l.b16 %v61
  %v198 = vunpack.c.l.b16 %v62
  %v199 = vunpack.c.l.b16 %v63
  %v200 = vunpack.c.l.b16 %v64
  %v201 = vunpack.c.l.b16 %v65
  %v202 = vunpack.c.l.b16 %v66
  %v203 = vunpack.c.l.b16 %v67
  %v204 = vunpack.c.l.b16 %v68
  %v205 = vunpack.c.l.b16 %v69
  %v206 = vunpack.c.l.b16 %v70
  %v207 = vunpack.c.l.b16 %v71
  %v208 = vunpack.c.l.b16 %v72
  %v209 = vunpack.c.l.b16 %v73
  %v210 = vunpack.c.l.b16 %v74
  %v211 = vunpack.c.l.b16 %v75
  %v212 = vunpack.c.l.b16 %v76
  %v213 = vunpack.c.l.b16 %v77
  %v214 = vunpack.c.l.b16 %v78
  %v215 = vpack.c.b16 %v152, %v151
  %v216 = vpack.c.b16 %v154, %v153
  %v217 = vpack.c.b16 %v156, %v155
  %v218 = vpack.c.b16 %v158, %v157
  %v219 = vpack.c.b16 %v160, %v159
  %v220 = vpack.c.b16 %v162, %v161
  %v221 = vpack.c.b16 %v164, %v163
  %v222 = vpack.c.b16 %v166, %v165
  %v223 = vpack.c.b16 %v168, %v167
  %v224 = vpack.c.b16 %v170, %v169
  %v225 = vpack.c.b16 %v172, %v171
  %v226 = vpack.c.b16 %v174, %v173
  %v227 = vpack.c.b16 %v176, %v175
  %v228 = vpack.c.b16 %v178, %v177
  %v229 = vpack.c.b16 %v180, %v179
  %v230 = vpack.c.b16 %v182, %v181
  %v231 = vpack.c.b16 %v184, %v183
  %v232 = vpack.c.b16 %v186, %v185
  %v233 = vpack.c.b16 %v188, %v187
  %v234 = vpack.c.b16 %v190, %v189
  %v235 = vpack.c.b16 %v192, %v191
  %v236 = vpack.c.b16 %v194, %v193
  %v237 = vpack.c.b16 %v196, %v195
  %v238 = vpack.c.b16 %v198, %v197
  %v239 = vpack.c.b16 %v200, %v199
  %v240 = vpack.c.b16 %v202, %v201
  %v241 = vpack.c.b16 %v204, %v203
  %v242 = vpack.c.b16 %v206, %v205
  %v243 = vpack.c.b16 %v208, %v207
  %v244 = vpack.c.b16 %v210, %v209
  %v245 = vpack.c.b16 %v212, %v211
  %v246 = vpack.c.b16 %v214, %v213
  %v251 = vunpack.c.l.b16 %v79
  %v252 = vunpack.c.l.b16 %v80
  %v253 = vunpack.c.l.b16 %v81
  %v254 = vunpack.c.l.b16 %v82
  %v255 = vpack.c.b16 %v252, %v251
  %v256 = vpack.c.b16 %v254, %v253
  %vm258 = vcmask 220160
  %v260 = vsel %vm258, %v215, 0
  %v263 = vsel %vm258, %v216, 0
  %v266 = vsel %vm258, %v217, 0
  %v269 = vsel %vm258, %v218, 0
  %v272 = vsel %vm258, %v219, 0
  %v275 = vsel %vm258, %v220, 0
  %v278 = vsel %vm258, %v221, 0
  %v281 = vsel %vm258, %v222, 0
  %v284 = vsel %vm258, %v223, 0
  %v287 = vsel %vm258, %v224, 0
  %v290 = vsel %vm258, %v225, 0
  %v293 = vsel %vm258, %v226, 0
  %v296 = vsel %vm258, %v227, 0
  %v299 = vsel %vm258, %v228, 0
  %v302 = vsel %vm258, %v229, 0
  %v305 = vsel %vm258, %v230, 0
  %v308 = vsel %vm258, %v231, 0
  %v311 = vsel %vm258, %v232, 0
  %v314 = vsel %vm258, %v233, 0
  %v317 = vsel %vm258, %v234, 0
  %v320 = vsel %vm258, %v235, 0
  %v323 = vsel %vm258, %v236, 0
  %v326 = vsel %vm258, %v237, 0
  %v329 = vsel %vm258, %v238, 0
  %v332 = vsel %vm258, %v239, 0
  %v335 = vsel %vm258, %v240, 0
  %v338 = vsel %vm258, %v241, 0
  %v341 = vsel %vm258, %v242, 0
  %v344 = vsel %vm258, %v243, 0
  %v347 = vsel %vm258, %v244, 0
  %v350 = vsel %vm258, %v245, 0
  %v353 = vsel %vm258, %v246, 0
  %vm355 = vcmask 1044480
  %vm356 = vcmask 1045504
  %v357 = vsel %vm355, 4294967295, 65535
  %v358 = vsel %vm356, %v357, 0
  %v360 = vand.u32 %v256, %v358
  %362 = vmatpush.bf16.msra.mxu0 0
  %363 = vmatpush.bf16.msra.mxu0 0
  %364 = vmatpush.bf16.msra.mxu0 0
  %365 = vmatpush.bf16.msra.mxu0 0
  %366 = vmatpush.bf16.msra.mxu0 0
  %367 = vmatpush.bf16.msra.mxu0 0
  %368 = vmatpush.bf16.msra.mxu0 %v360
  %369 = vmatpush.bf16.msra.mxu0 %v255
  %370 = vmatmul.bf16.gmra.mxu0 %v260
  %v371 = vpop.f32.mrf.mxu0
  %v372 = vadd.f32 %v85, %v371
  %v373 = vpop.f32.mrf.mxu0
  %v374 = vadd.f32 %v85, %v373
  %375 = vmatmul.bf16.gmra.mxu0 %v263
  %v376 = vpop.f32.mrf.mxu0
  %v377 = vadd.f32 %v85, %v376
  %v378 = vpop.f32.mrf.mxu0
  %v379 = vadd.f32 %v85, %v378
  %380 = vmatmul.bf16.gmra.mxu0 %v266
  %v381 = vpop.f32.mrf.mxu0
  %v382 = vadd.f32 %v85, %v381
  %v383 = vpop.f32.mrf.mxu0
  %v384 = vadd.f32 %v85, %v383
  %385 = vmatmul.bf16.gmra.mxu0 %v269
  %v386 = vpop.f32.mrf.mxu0
  %v387 = vadd.f32 %v85, %v386
  %v388 = vpop.f32.mrf.mxu0
  %v389 = vadd.f32 %v85, %v388
  %390 = vmatmul.bf16.gmra.mxu0 %v272
  %v391 = vpop.f32.mrf.mxu0
  %v392 = vadd.f32 %v85, %v391
  %v393 = vpop.f32.mrf.mxu0
  %v394 = vadd.f32 %v85, %v393
  %395 = vmatmul.bf16.gmra.mxu0 %v275
  %v396 = vpop.f32.mrf.mxu0
  %v397 = vadd.f32 %v85, %v396
  %v398 = vpop.f32.mrf.mxu0
  %v399 = vadd.f32 %v85, %v398
  %400 = vmatmul.bf16.gmra.mxu0 %v278
  %v401 = vpop.f32.mrf.mxu0
  %v402 = vadd.f32 %v85, %v401
  %v403 = vpop.f32.mrf.mxu0
  %v404 = vadd.f32 %v85, %v403
  %405 = vmatmul.bf16.gmra.mxu0 %v281
  %v406 = vpop.f32.mrf.mxu0
  %v407 = vadd.f32 %v85, %v406
  %v408 = vpop.f32.mrf.mxu0
  %v409 = vadd.f32 %v85, %v408
  %410 = vmatmul.bf16.gmra.mxu0 %v284
  %v411 = vpop.f32.mrf.mxu0
  %v412 = vadd.f32 %v85, %v411
  %v413 = vpop.f32.mrf.mxu0
  %v414 = vadd.f32 %v85, %v413
  %415 = vmatmul.bf16.gmra.mxu0 %v287
  %v416 = vpop.f32.mrf.mxu0
  %v417 = vadd.f32 %v85, %v416
  %v418 = vpop.f32.mrf.mxu0
  %v419 = vadd.f32 %v85, %v418
  %420 = vmatmul.bf16.gmra.mxu0 %v290
  %v421 = vpop.f32.mrf.mxu0
  %v422 = vadd.f32 %v85, %v421
  %v423 = vpop.f32.mrf.mxu0
  %v424 = vadd.f32 %v85, %v423
  %425 = vmatmul.bf16.gmra.mxu0 %v293
  %v426 = vpop.f32.mrf.mxu0
  %v427 = vadd.f32 %v85, %v426
  %v428 = vpop.f32.mrf.mxu0
  %v429 = vadd.f32 %v85, %v428
  %430 = vmatmul.bf16.gmra.mxu0 %v296
  %v431 = vpop.f32.mrf.mxu0
  %v432 = vadd.f32 %v85, %v431
  %v433 = vpop.f32.mrf.mxu0
  %v434 = vadd.f32 %v85, %v433
  %435 = vmatmul.bf16.gmra.mxu0 %v299
  %v436 = vpop.f32.mrf.mxu0
  %v437 = vadd.f32 %v85, %v436
  %v438 = vpop.f32.mrf.mxu0
  %v439 = vadd.f32 %v85, %v438
  %440 = vmatmul.bf16.gmra.mxu0 %v302
  %v441 = vpop.f32.mrf.mxu0
  %v442 = vadd.f32 %v85, %v441
  %v443 = vpop.f32.mrf.mxu0
  %v444 = vadd.f32 %v85, %v443
  %445 = vmatmul.bf16.gmra.mxu0 %v305
  %v446 = vpop.f32.mrf.mxu0
  %v447 = vadd.f32 %v85, %v446
  %v448 = vpop.f32.mrf.mxu0
  %v449 = vadd.f32 %v85, %v448
  %450 = vmatmul.bf16.gmra.mxu0 %v308
  %v451 = vpop.f32.mrf.mxu0
  %v452 = vadd.f32 %v85, %v451
  %v453 = vpop.f32.mrf.mxu0
  %v454 = vadd.f32 %v85, %v453
  %455 = vmatmul.bf16.gmra.mxu0 %v311
  %v456 = vpop.f32.mrf.mxu0
  %v457 = vadd.f32 %v85, %v456
  %v458 = vpop.f32.mrf.mxu0
  %v459 = vadd.f32 %v85, %v458
  %460 = vmatmul.bf16.gmra.mxu0 %v314
  %v461 = vpop.f32.mrf.mxu0
  %v462 = vadd.f32 %v85, %v461
  %v463 = vpop.f32.mrf.mxu0
  %v464 = vadd.f32 %v85, %v463
  %465 = vmatmul.bf16.gmra.mxu0 %v317
  %v466 = vpop.f32.mrf.mxu0
  %v467 = vadd.f32 %v85, %v466
  %v468 = vpop.f32.mrf.mxu0
  %v469 = vadd.f32 %v85, %v468
  %470 = vmatmul.bf16.gmra.mxu0 %v320
  %v471 = vpop.f32.mrf.mxu0
  %v472 = vadd.f32 %v85, %v471
  %v473 = vpop.f32.mrf.mxu0
  %v474 = vadd.f32 %v85, %v473
  %475 = vmatmul.bf16.gmra.mxu0 %v323
  %v476 = vpop.f32.mrf.mxu0
  %v477 = vadd.f32 %v85, %v476
  %v478 = vpop.f32.mrf.mxu0
  %v479 = vadd.f32 %v85, %v478
  %480 = vmatmul.bf16.gmra.mxu0 %v326
  %v481 = vpop.f32.mrf.mxu0
  %v482 = vadd.f32 %v85, %v481
  %v483 = vpop.f32.mrf.mxu0
  %v484 = vadd.f32 %v85, %v483
  %485 = vmatmul.bf16.gmra.mxu0 %v329
  %v486 = vpop.f32.mrf.mxu0
  %v487 = vadd.f32 %v85, %v486
  %v488 = vpop.f32.mrf.mxu0
  %v489 = vadd.f32 %v85, %v488
  %490 = vmatmul.bf16.gmra.mxu0 %v332
  %v491 = vpop.f32.mrf.mxu0
  %v492 = vadd.f32 %v85, %v491
  %v493 = vpop.f32.mrf.mxu0
  %v494 = vadd.f32 %v85, %v493
  %495 = vmatmul.bf16.gmra.mxu0 %v335
  %v496 = vpop.f32.mrf.mxu0
  %v497 = vadd.f32 %v85, %v496
  %v498 = vpop.f32.mrf.mxu0
  %v499 = vadd.f32 %v85, %v498
  %500 = vmatmul.bf16.gmra.mxu0 %v338
  %v501 = vpop.f32.mrf.mxu0
  %v502 = vadd.f32 %v85, %v501
  %v503 = vpop.f32.mrf.mxu0
  %v504 = vadd.f32 %v85, %v503
  %505 = vmatmul.bf16.gmra.mxu0 %v341
  %v506 = vpop.f32.mrf.mxu0
  %v507 = vadd.f32 %v85, %v506
  %v508 = vpop.f32.mrf.mxu0
  %v509 = vadd.f32 %v85, %v508
  %510 = vmatmul.bf16.gmra.mxu0 %v344
  %v511 = vpop.f32.mrf.mxu0
  %v512 = vadd.f32 %v85, %v511
  %v513 = vpop.f32.mrf.mxu0
  %v514 = vadd.f32 %v85, %v513
  %515 = vmatmul.bf16.gmra.mxu0 %v347
  %v516 = vpop.f32.mrf.mxu0
  %v517 = vadd.f32 %v85, %v516
  %v518 = vpop.f32.mrf.mxu0
  %v519 = vadd.f32 %v85, %v518
  %520 = vmatmul.bf16.gmra.mxu0 %v350
  %v521 = vpop.f32.mrf.mxu0
  %v522 = vadd.f32 %v85, %v521
  %v523 = vpop.f32.mrf.mxu0
  %v524 = vadd.f32 %v85, %v523
  %525 = vmatmul.bf16.gmra.mxu0 %v353
  %v526 = vpop.f32.mrf.mxu0
  %v527 = vadd.f32 %v85, %v526
  %v528 = vpop.f32.mrf.mxu0
  %v529 = vadd.f32 %v85, %v528
  %530 = vdwg.mxu0
  %v531 = vmax.f32 %v372, 0.0
  %v532 = vmax.f32 %v374, 0.0
  %v533 = vmax.f32 %v377, 0.0
  %v534 = vmax.f32 %v379, 0.0
  %v535 = vmax.f32 %v382, 0.0
  %v536 = vmax.f32 %v384, 0.0
  %v537 = vmax.f32 %v387, 0.0
  %v538 = vmax.f32 %v389, 0.0
  %v539 = vmax.f32 %v392, 0.0
  %v540 = vmax.f32 %v394, 0.0
  %v541 = vmax.f32 %v397, 0.0
  %v542 = vmax.f32 %v399, 0.0
  %v543 = vmax.f32 %v402, 0.0
  %v544 = vmax.f32 %v404, 0.0
  %v545 = vmax.f32 %v407, 0.0
  %v546 = vmax.f32 %v409, 0.0
  %v547 = vmax.f32 %v412, 0.0
  %v548 = vmax.f32 %v414, 0.0
  %v549 = vmax.f32 %v417, 0.0
  %v550 = vmax.f32 %v419, 0.0
  %v551 = vmax.f32 %v422, 0.0
  %v552 = vmax.f32 %v424, 0.0
  %v553 = vmax.f32 %v427, 0.0
  %v554 = vmax.f32 %v429, 0.0
  %v555 = vmax.f32 %v432, 0.0
  %v556 = vmax.f32 %v434, 0.0
  %v557 = vmax.f32 %v437, 0.0
  %v558 = vmax.f32 %v439, 0.0
  %v559 = vmax.f32 %v442, 0.0
  %v560 = vmax.f32 %v444, 0.0
  %v561 = vmax.f32 %v447, 0.0
  %v562 = vmax.f32 %v449, 0.0
  %v563 = vmax.f32 %v452, 0.0
  %v564 = vmax.f32 %v454, 0.0
  %v565 = vmax.f32 %v457, 0.0
  %v566 = vmax.f32 %v459, 0.0
  %v567 = vmax.f32 %v462, 0.0
  %v568 = vmax.f32 %v464, 0.0
  %v569 = vmax.f32 %v467, 0.0
  %v570 = vmax.f32 %v469, 0.0
  %v571 = vmax.f32 %v472, 0.0
  %v572 = vmax.f32 %v474, 0.0
  %v573 = vmax.f32 %v477, 0.0
  %v574 = vmax.f32 %v479, 0.0
  %v575 = vmax.f32 %v482, 0.0
  %v576 = vmax.f32 %v484, 0.0
  %v577 = vmax.f32 %v487, 0.0
  %v578 = vmax.f32 %v489, 0.0
  %v579 = vmax.f32 %v492, 0.0
  %v580 = vmax.f32 %v494, 0.0
  %v581 = vmax.f32 %v497, 0.0
  %v582 = vmax.f32 %v499, 0.0
  %v583 = vmax.f32 %v502, 0.0
  %v584 = vmax.f32 %v504, 0.0
  %v585 = vmax.f32 %v507, 0.0
  %v586 = vmax.f32 %v509, 0.0
  %v587 = vmax.f32 %v512, 0.0
  %v588 = vmax.f32 %v514, 0.0
  %v589 = vmax.f32 %v517, 0.0
  %v590 = vmax.f32 %v519, 0.0
  %v591 = vmax.f32 %v522, 0.0
  %v592 = vmax.f32 %v524, 0.0
  %v593 = vmax.f32 %v527, 0.0
  %v594 = vmax.f32 %v529, 0.0
  %v595 = vmin.f32 %v531, 6.0
  %v596 = vmin.f32 %v532, 6.0
  %v597 = vmin.f32 %v533, 6.0
  %v598 = vmin.f32 %v534, 6.0
  %v599 = vmin.f32 %v535, 6.0
  %v600 = vmin.f32 %v536, 6.0
  %v601 = vmin.f32 %v537, 6.0
  %v602 = vmin.f32 %v538, 6.0
  %v603 = vmin.f32 %v539, 6.0
  %v604 = vmin.f32 %v540, 6.0
  %v605 = vmin.f32 %v541, 6.0
  %v606 = vmin.f32 %v542, 6.0
  %v607 = vmin.f32 %v543, 6.0
  %v608 = vmin.f32 %v544, 6.0
  %v609 = vmin.f32 %v545, 6.0
  %v610 = vmin.f32 %v546, 6.0
  %v611 = vmin.f32 %v547, 6.0
  %v612 = vmin.f32 %v548, 6.0
  %v613 = vmin.f32 %v549, 6.0
  %v614 = vmin.f32 %v550, 6.0
  %v615 = vmin.f32 %v551, 6.0
  %v616 = vmin.f32 %v552, 6.0
  %v617 = vmin.f32 %v553, 6.0
  %v618 = vmin.f32 %v554, 6.0
  %v619 = vmin.f32 %v555, 6.0
  %v620 = vmin.f32 %v556, 6.0
  %v621 = vmin.f32 %v557, 6.0
  %v622 = vmin.f32 %v558, 6.0
  %v623 = vmin.f32 %v559, 6.0
  %v624 = vmin.f32 %v560, 6.0
  %v625 = vmin.f32 %v561, 6.0
  %v626 = vmin.f32 %v562, 6.0
  %v627 = vmin.f32 %v563, 6.0
  %v628 = vmin.f32 %v564, 6.0
  %v629 = vmin.f32 %v565, 6.0
  %v630 = vmin.f32 %v566, 6.0
  %v631 = vmin.f32 %v567, 6.0
  %v632 = vmin.f32 %v568, 6.0
  %v633 = vmin.f32 %v569, 6.0
  %v634 = vmin.f32 %v570, 6.0
  %v635 = vmin.f32 %v571, 6.0
  %v636 = vmin.f32 %v572, 6.0
  %v637 = vmin.f32 %v573, 6.0
  %v638 = vmin.f32 %v574, 6.0
  %v639 = vmin.f32 %v575, 6.0
  %v640 = vmin.f32 %v576, 6.0
  %v641 = vmin.f32 %v577, 6.0
  %v642 = vmin.f32 %v578, 6.0
  %v643 = vmin.f32 %v579, 6.0
  %v644 = vmin.f32 %v580, 6.0
  %v645 = vmin.f32 %v581, 6.0
  %v646 = vmin.f32 %v582, 6.0
  %v647 = vmin.f32 %v583, 6.0
  %v648 = vmin.f32 %v584, 6.0
  %v649 = vmin.f32 %v585, 6.0
  %v650 = vmin.f32 %v586, 6.0
  %v651 = vmin.f32 %v587, 6.0
  %v652 = vmin.f32 %v588, 6.0
  %v653 = vmin.f32 %v589, 6.0
  %v654 = vmin.f32 %v590, 6.0
  %v655 = vmin.f32 %v591, 6.0
  %v656 = vmin.f32 %v592, 6.0
  %v657 = vmin.f32 %v593, 6.0
  %v658 = vmin.f32 %v594, 6.0
  %v659 = vpack.c.bf16 %v595, %v595
  %v660 = vpack.c.bf16 %v596, %v596
  %v661 = vpack.c.bf16 %v597, %v597
  %v662 = vpack.c.bf16 %v598, %v598
  %v663 = vpack.c.bf16 %v599, %v599
  %v664 = vpack.c.bf16 %v600, %v600
  %v665 = vpack.c.bf16 %v601, %v601
  %v666 = vpack.c.bf16 %v602, %v602
  %v667 = vpack.c.bf16 %v603, %v603
  %v668 = vpack.c.bf16 %v604, %v604
  %v669 = vpack.c.bf16 %v605, %v605
  %v670 = vpack.c.bf16 %v606, %v606
  %v671 = vpack.c.bf16 %v607, %v607
  %v672 = vpack.c.bf16 %v608, %v608
  %v673 = vpack.c.bf16 %v609, %v609
  %v674 = vpack.c.bf16 %v610, %v610
  %v675 = vpack.c.bf16 %v611, %v611
  %v676 = vpack.c.bf16 %v612, %v612
  %v677 = vpack.c.bf16 %v613, %v613
  %v678 = vpack.c.bf16 %v614, %v614
  %v679 = vpack.c.bf16 %v615, %v615
  %v680 = vpack.c.bf16 %v616, %v616
  %v681 = vpack.c.bf16 %v617, %v617
  %v682 = vpack.c.bf16 %v618, %v618
  %v683 = vpack.c.bf16 %v619, %v619
  %v684 = vpack.c.bf16 %v620, %v620
  %v685 = vpack.c.bf16 %v621, %v621
  %v686 = vpack.c.bf16 %v622, %v622
  %v687 = vpack.c.bf16 %v623, %v623
  %v688 = vpack.c.bf16 %v624, %v624
  %v689 = vpack.c.bf16 %v625, %v625
  %v690 = vpack.c.bf16 %v626, %v626
  %v691 = vpack.c.bf16 %v627, %v627
  %v692 = vpack.c.bf16 %v628, %v628
  %v693 = vpack.c.bf16 %v629, %v629
  %v694 = vpack.c.bf16 %v630, %v630
  %v695 = vpack.c.bf16 %v631, %v631
  %v696 = vpack.c.bf16 %v632, %v632
  %v697 = vpack.c.bf16 %v633, %v633
  %v698 = vpack.c.bf16 %v634, %v634
  %v699 = vpack.c.bf16 %v635, %v635
  %v700 = vpack.c.bf16 %v636, %v636
  %v701 = vpack.c.bf16 %v637, %v637
  %v702 = vpack.c.bf16 %v638, %v638
  %v703 = vpack.c.bf16 %v639, %v639
  %v704 = vpack.c.bf16 %v640, %v640
  %v705 = vpack.c.bf16 %v641, %v641
  %v706 = vpack.c.bf16 %v642, %v642
  %v707 = vpack.c.bf16 %v643, %v643
  %v708 = vpack.c.bf16 %v644, %v644
  %v709 = vpack.c.bf16 %v645, %v645
  %v710 = vpack.c.bf16 %v646, %v646
  %v711 = vpack.c.bf16 %v647, %v647
  %v712 = vpack.c.bf16 %v648, %v648
  %v713 = vpack.c.bf16 %v649, %v649
  %v714 = vpack.c.bf16 %v650, %v650
  %v715 = vpack.c.bf16 %v651, %v651
  %v716 = vpack.c.bf16 %v652, %v652
  %v717 = vpack.c.bf16 %v653, %v653
  %v718 = vpack.c.bf16 %v654, %v654
  %v719 = vpack.c.bf16 %v655, %v655
  %v720 = vpack.c.bf16 %v656, %v656
  %v721 = vpack.c.bf16 %v657, %v657
  %v722 = vpack.c.bf16 %v658, %v658
  %vm723 = vcmask 257024
  %724 = vst.msk [vmem:[%s3] sm:$0xf] %vm723, %v659
  %725 = vst.msk [vmem:[%s3 + $0x4] sm:$0xf] %vm723, %v660
  %726 = vst.msk [vmem:[%s3 + $0x8] sm:$0xf] %vm723, %v661
  %727 = vst.msk [vmem:[%s3 + $0xc] sm:$0xf] %vm723, %v662
  %728 = vst.msk [vmem:[%s3 + $0x10] sm:$0xf] %vm723, %v663
  %729 = vst.msk [vmem:[%s3 + $0x14] sm:$0xf] %vm723, %v664
  %730 = vst.msk [vmem:[%s3 + $0x18] sm:$0xf] %vm723, %v665
  %731 = vst.msk [vmem:[%s3 + $0x1c] sm:$0xf] %vm723, %v666
  %732 = vst.msk [vmem:[%s3 + $0x20] sm:$0xf] %vm723, %v667
  %733 = vst.msk [vmem:[%s3 + $0x24] sm:$0xf] %vm723, %v668
  %734 = vst.msk [vmem:[%s3 + $0x28] sm:$0xf] %vm723, %v669
  %735 = vst.msk [vmem:[%s3 + $0x2c] sm:$0xf] %vm723, %v670
  %736 = vst.msk [vmem:[%s3 + $0x30] sm:$0xf] %vm723, %v671
  %737 = vst.msk [vmem:[%s3 + $0x34] sm:$0xf] %vm723, %v672
  %738 = vst.msk [vmem:[%s3 + $0x38] sm:$0xf] %vm723, %v673
  %739 = vst.msk [vmem:[%s3 + $0x3c] sm:$0xf] %vm723, %v674
  %740 = vst.msk [vmem:[%s3 + $0x40] sm:$0xf] %vm723, %v675
  %741 = vst.msk [vmem:[%s3 + $0x44] sm:$0xf] %vm723, %v676
  %742 = vst.msk [vmem:[%s3 + $0x48] sm:$0xf] %vm723, %v677
  %743 = vst.msk [vmem:[%s3 + $0x4c] sm:$0xf] %vm723, %v678
  %744 = vst.msk [vmem:[%s3 + $0x50] sm:$0xf] %vm723, %v679
  %745 = vst.msk [vmem:[%s3 + $0x54] sm:$0xf] %vm723, %v680
  %746 = vst.msk [vmem:[%s3 + $0x58] sm:$0xf] %vm723, %v681
  %747 = vst.msk [vmem:[%s3 + $0x5c] sm:$0xf] %vm723, %v682
  %748 = vst.msk [vmem:[%s3 + $0x60] sm:$0xf] %vm723, %v683
  %749 = vst.msk [vmem:[%s3 + $0x64] sm:$0xf] %vm723, %v684
  %750 = vst.msk [vmem:[%s3 + $0x68] sm:$0xf] %vm723, %v685
  %751 = vst.msk [vmem:[%s3 + $0x6c] sm:$0xf] %vm723, %v686
  %752 = vst.msk [vmem:[%s3 + $0x70] sm:$0xf] %vm723, %v687
  %753 = vst.msk [vmem:[%s3 + $0x74] sm:$0xf] %vm723, %v688
  %754 = vst.msk [vmem:[%s3 + $0x78] sm:$0xf] %vm723, %v689
  %755 = vst.msk [vmem:[%s3 + $0x7c] sm:$0xf] %vm723, %v690
  %756 = vst.msk [vmem:[%s3 + $0x80] sm:$0xf] %vm723, %v691
  %757 = vst.msk [vmem:[%s3 + $0x84] sm:$0xf] %vm723, %v692
  %758 = vst.msk [vmem:[%s3 + $0x88] sm:$0xf] %vm723, %v693
  %759 = vst.msk [vmem:[%s3 + $0x8c] sm:$0xf] %vm723, %v694
  %760 = vst.msk [vmem:[%s3 + $0x90] sm:$0xf] %vm723, %v695
  %761 = vst.msk [vmem:[%s3 + $0x94] sm:$0xf] %vm723, %v696
  %762 = vst.msk [vmem:[%s3 + $0x98] sm:$0xf] %vm723, %v697
  %763 = vst.msk [vmem:[%s3 + $0x9c] sm:$0xf] %vm723, %v698
  %764 = vst.msk [vmem:[%s3 + $0xa0] sm:$0xf] %vm723, %v699
  %765 = vst.msk [vmem:[%s3 + $0xa4] sm:$0xf] %vm723, %v700
  %766 = vst.msk [vmem:[%s3 + $0xa8] sm:$0xf] %vm723, %v701
  %767 = vst.msk [vmem:[%s3 + $0xac] sm:$0xf] %vm723, %v702
  %768 = vst.msk [vmem:[%s3 + $0xb0] sm:$0xf] %vm723, %v703
  %769 = vst.msk [vmem:[%s3 + $0xb4] sm:$0xf] %vm723, %v704
  %770 = vst.msk [vmem:[%s3 + $0xb8] sm:$0xf] %vm723, %v705
  %771 = vst.msk [vmem:[%s3 + $0xbc] sm:$0xf] %vm723, %v706
  %772 = vst.msk [vmem:[%s3 + $0xc0] sm:$0xf] %vm723, %v707
  %773 = vst.msk [vmem:[%s3 + $0xc4] sm:$0xf] %vm723, %v708
  %774 = vst.msk [vmem:[%s3 + $0xc8] sm:$0xf] %vm723, %v709
  %775 = vst.msk [vmem:[%s3 + $0xcc] sm:$0xf] %vm723, %v710
  %776 = vst.msk [vmem:[%s3 + $0xd0] sm:$0xf] %vm723, %v711
  %777 = vst.msk [vmem:[%s3 + $0xd4] sm:$0xf] %vm723, %v712
  %778 = vst.msk [vmem:[%s3 + $0xd8] sm:$0xf] %vm723, %v713
  %779 = vst.msk [vmem:[%s3 + $0xdc] sm:$0xf] %vm723, %v714
  %780 = vst.msk [vmem:[%s3 + $0xe0] sm:$0xf] %vm723, %v715
  %781 = vst.msk [vmem:[%s3 + $0xe4] sm:$0xf] %vm723, %v716
  %782 = vst.msk [vmem:[%s3 + $0xe8] sm:$0xf] %vm723, %v717
  %783 = vst.msk [vmem:[%s3 + $0xec] sm:$0xf] %vm723, %v718
  %784 = vst.msk [vmem:[%s3 + $0xf0] sm:$0xf] %vm723, %v719
  %785 = vst.msk [vmem:[%s3 + $0xf4] sm:$0xf] %vm723, %v720
  %786 = vst.msk [vmem:[%s3 + $0xf8] sm:$0xf] %vm723, %v721
  %787 = vst.msk [vmem:[%s3 + $0xfc] sm:$0xf] %vm723, %v722
  // Predicated region
  $region14: #{tpu_custom_call.1} parent=0 // pred_check
    _
  $region15: #{tpu_custom_call.1} parent=0 // pred_check_branch
    %789 = sbr.rel (0) target = $region17
  $region16: #{tpu_custom_call.1} parent=0 // pred_region
    _
  $region17: #{tpu_custom_call.1} parent=0 // pred_fallthru
    _
  // Predicated region
  $region18: #{tpu_custom_call.1} parent=0 // pred_check
    _
  $region19: #{tpu_custom_call.1} parent=0 // pred_check_branch
    %791 = sbr.rel (0) target = $region21
  $region20: #{tpu_custom_call.1} parent=0 // pred_region
    _
  $region21: #{tpu_custom_call.1} parent=0 // pred_fallthru
    _

</llo_original>
